<compile_context>
chip_gen: v7x
topology: tpu7x:2x2x1
jax: 0.10.0
libtpu: 0.0.40
codegen_flags: <defaults>
</compile_context>

<pallas_src>
import math

import jax
import jax.numpy as jnp
from jax.experimental import pallas as pl
from jax.experimental.pallas import tpu as pltpu

MAX_LENGTH = 10000


def _pe_kernel(x_ref, coef_ref, phase_ref, o_ref):
    # x_ref:     (TR, P)    f32 positions, P consecutive positions per row
    # coef_ref:  (P, LANE)  f32, coef[j, j*dim + d] = div_full[d], 0 elsewhere
    # phase_ref: (1, LANE)  f32, 0.0 on sin lanes, pi/2 on cos lanes
    # o_ref:     (TR, LANE) f32 lane-dense output
    pos = x_ref[...]
    coef = coef_ref[...]
    p = coef.shape[0]
    # For a lane in group j, all other groups contribute exactly +0.0, so the
    # matched lane sees the single f32 multiply pos * div (same as the table).
    ang = phase_ref[...] + pos[:, 0:1] * coef[0:1, :]
    for j in range(1, p):                       # tiny static unroll (P = 128 // dim)
        ang = ang + pos[:, j:j + 1] * coef[j:j + 1, :]
    o_ref[...] = jnp.sin(ang)                   # single EUP transcendental per element


def _round_up(a, b):
    return (a + b - 1) // b * b


def positional_embedding(x, dim, max_length=MAX_LENGTH, row_block=1024):
    """Equivalent of PositionalEmbedding(dim, max_length).forward(x)."""
    assert dim % 2 == 0, "PositionalEmbedding requires an even dim"
    orig_shape = x.shape
    # positions < max_length << 2^24, so the f32 cast is exact
    xf = x.reshape(-1).astype(jnp.float32)
    n = xf.shape[0]

    # Fold P consecutive positions into each output row so the stored last dim
    # is a multiple of 128 (lane-dense, unmasked stores). dim >= 128 (or a dim
    # that does not divide 128) falls back to P = 1.
    p = 128 // dim if (dim < 128 and 128 % dim == 0) else 1
    lane = p * dim

    n_rows = pl.cdiv(n, p)
    tile_rows = min(_round_up(n_rows, 8), _round_up(row_block, 8))
    n_rows_pad = _round_up(n_rows, tile_rows)
    grid = n_rows_pad // tile_rows            # >= 2 steps for any realistic N,
                                              # so v7x megacore gets both TCs busy

    xp = jnp.pad(xf, (0, n_rows_pad * p - n)).reshape(n_rows_pad, p)

    # Buffer setup -- identical math to make_embedding, laid out per lane:
    #   div_full[2k] = div_full[2k+1] = div_term[k]; phase 0 / pi/2 selects sin/cos.
    half = jnp.arange(0, dim, 2, dtype=jnp.float32)
    div_term = jnp.exp(half * (-math.log(max_length / 2 / math.pi) / dim))
    div_full = jnp.repeat(div_term, 2)                                     # (dim,)
    phase_full = jnp.tile(jnp.array([0.0, math.pi / 2], jnp.float32), dim // 2)
    coef = (jnp.eye(p, dtype=jnp.float32)[:, :, None]
            * div_full[None, None, :]).reshape(p, lane)                    # (P, lane)
    phase = jnp.tile(phase_full, p).reshape(1, lane)                       # (1, lane)

    out = pl.pallas_call(
        _pe_kernel,
        out_shape=jax.ShapeDtypeStruct((n_rows_pad, lane), jnp.float32),
        grid=(grid,),
        in_specs=[
            pl.BlockSpec((tile_rows, p), lambda i: (i, 0)),   # per-tile positions
            pl.BlockSpec((p, lane), lambda i: (0, 0)),        # resident coef table
            pl.BlockSpec((1, lane), lambda i: (0, 0)),        # resident phase row
        ],
        out_specs=pl.BlockSpec((tile_rows, lane), lambda i: (i, 0)),
        compiler_params=pltpu.CompilerParams(
            dimension_semantics=("parallel",)),
    )(xp, coef, phase)

    # (n_rows_pad, P*dim) row-major == (n_rows_pad*P, dim): undo the lane packing.
    return out.reshape(-1, dim)[:n].reshape(*orig_shape, dim)


def _make_embedding_ref(dim, max_length=MAX_LENGTH):
    # Pure-JAX port of PositionalEmbedding.make_embedding, for verification.
    position = jnp.arange(0, max_length, dtype=jnp.float32)[:, None]
    div_term = jnp.exp(jnp.arange(0, dim, 2, dtype=jnp.float32)
                       * (-math.log(max_length / 2 / math.pi) / dim))
    emb = jnp.zeros((max_length, dim), jnp.float32)
    emb = emb.at[:, 0::2].set(jnp.sin(position * div_term))
    emb = emb.at[:, 1::2].set(jnp.cos(position * div_term))
    return emb


if __name__ == "__main__":
    dim = 32        # UNet embed_dim (even, as the torch module requires)
    batch = 8       # number of timestep indices

    key = jax.random.PRNGKey(0)
    x = jax.random.randint(key, (batch,), 0, MAX_LENGTH, dtype=jnp.int32)

    out = jax.block_until_ready(positional_embedding(x, dim))

    ref = _make_embedding_ref(dim)[x]
    assert out.shape == (batch, dim) and out.dtype == jnp.float32
    # sin lanes are bit-identical to the table; cos lanes use sin(theta + pi/2),
    # which can differ from a native cos by O(ulp(theta)) ~ 5e-4 at theta ~ 1e4.
    assert bool(jnp.allclose(out, ref, atol=2e-3, rtol=0.0))
    print("KERNEL_OK")
</pallas_src>

<mosaic_0001>
module attributes {stable_mosaic.version = 11 : i64} {
  func.func @_pe_kernel(%arg0: i32, %arg1: memref<8x4xf32, #tpu.memory_space<vmem>>, %arg2: memref<4x128xf32, #tpu.memory_space<vmem>>, %arg3: memref<1x128xf32, #tpu.memory_space<vmem>>, %arg4: memref<8x128xf32, #tpu.memory_space<vmem>>) attributes {dimension_semantics = [#tpu.dimension_semantics<parallel>], iteration_bounds = array<i64: 1>, scalar_prefetch = 0 : i64, scratch_operands = 0 : i64, tpu.core_type = #tpu.core_type<tc>, window_params = [{transform_indices = @transform_0, window_bounds = array<i64: 8, 4>}, {pipeline_mode = #tpu.pipeline_mode<synchronous>, transform_indices = @transform_1, window_bounds = array<i64: 4, 128>}, {pipeline_mode = #tpu.pipeline_mode<synchronous>, transform_indices = @transform_2, window_bounds = array<i64: 1, 128>}, {transform_indices = @transform_3, window_bounds = array<i64: 8, 128>}]} {
    %c0 = arith.constant 0 : index
    %c0_0 = arith.constant 0 : index
    %0 = vector.load %arg1[%c0, %c0_0] : memref<8x4xf32, #tpu.memory_space<vmem>>, vector<8x4xf32>
    %c0_1 = arith.constant 0 : index
    %c0_2 = arith.constant 0 : index
    %1 = vector.load %arg2[%c0_1, %c0_2] : memref<4x128xf32, #tpu.memory_space<vmem>>, vector<4x128xf32>
    %c0_3 = arith.constant 0 : index
    %c0_4 = arith.constant 0 : index
    %2 = vector.load %arg3[%c0_3, %c0_4] : memref<1x128xf32, #tpu.memory_space<vmem>>, vector<1x128xf32>
    %3 = vector.extract_strided_slice %0 {offsets = [0, 0], sizes = [8, 1], strides = [1, 1]} : vector<8x4xf32> to vector<8x1xf32>
    %4 = vector.extract_strided_slice %1 {offsets = [0, 0], sizes = [1, 128], strides = [1, 1]} : vector<4x128xf32> to vector<1x128xf32>
    %5 = vector.broadcast %3 : vector<8x1xf32> to vector<8x128xf32>
    %6 = vector.broadcast %4 : vector<1x128xf32> to vector<8x128xf32>
    %7 = arith.mulf %5, %6 : vector<8x128xf32>
    %8 = vector.broadcast %2 : vector<1x128xf32> to vector<8x128xf32>
    %9 = arith.addf %8, %7 : vector<8x128xf32>
    %10 = vector.extract_strided_slice %0 {offsets = [0, 1], sizes = [8, 1], strides = [1, 1]} : vector<8x4xf32> to vector<8x1xf32>
    %11 = vector.extract_strided_slice %1 {offsets = [1, 0], sizes = [1, 128], strides = [1, 1]} : vector<4x128xf32> to vector<1x128xf32>
    %12 = vector.broadcast %10 : vector<8x1xf32> to vector<8x128xf32>
    %13 = vector.broadcast %11 : vector<1x128xf32> to vector<8x128xf32>
    %14 = arith.mulf %12, %13 : vector<8x128xf32>
    %15 = arith.addf %9, %14 : vector<8x128xf32>
    %16 = vector.extract_strided_slice %0 {offsets = [0, 2], sizes = [8, 1], strides = [1, 1]} : vector<8x4xf32> to vector<8x1xf32>
    %17 = vector.extract_strided_slice %1 {offsets = [2, 0], sizes = [1, 128], strides = [1, 1]} : vector<4x128xf32> to vector<1x128xf32>
    %18 = vector.broadcast %16 : vector<8x1xf32> to vector<8x128xf32>
    %19 = vector.broadcast %17 : vector<1x128xf32> to vector<8x128xf32>
    %20 = arith.mulf %18, %19 : vector<8x128xf32>
    %21 = arith.addf %15, %20 : vector<8x128xf32>
    %22 = vector.extract_strided_slice %0 {offsets = [0, 3], sizes = [8, 1], strides = [1, 1]} : vector<8x4xf32> to vector<8x1xf32>
    %23 = vector.extract_strided_slice %1 {offsets = [3, 0], sizes = [1, 128], strides = [1, 1]} : vector<4x128xf32> to vector<1x128xf32>
    %24 = vector.broadcast %22 : vector<8x1xf32> to vector<8x128xf32>
    %25 = vector.broadcast %23 : vector<1x128xf32> to vector<8x128xf32>
    %26 = arith.mulf %24, %25 : vector<8x128xf32>
    %27 = arith.addf %21, %26 : vector<8x128xf32>
    %28 = math.sin %27 : vector<8x128xf32>
    %c0_5 = arith.constant 0 : index
    %c0_6 = arith.constant 0 : index
    %29 = vector.load %arg4[%c0_5, %c0_6] : memref<8x128xf32, #tpu.memory_space<vmem>>, vector<8x128xf32>
    tpu.vector_store %arg4[%c0_5, %c0_6], %28 {strides = array<i32>} : memref<8x128xf32, #tpu.memory_space<vmem>>, vector<8x128xf32>,
    return
  }
  func.func @transform_0(%arg0: i32) -> (i32, i32) {
    %c0_i32 = arith.constant 0 : i32
    %c0_i32_0 = arith.constant 0 : i32
    return %arg0, %c0_i32 : i32, i32
  }
  func.func @transform_1(%arg0: i32) -> (i32, i32) {
    %c0_i32 = arith.constant 0 : i32
    %c0_i32_0 = arith.constant 0 : i32
    %c0_i32_1 = arith.constant 0 : i32
    return %c0_i32, %c0_i32_0 : i32, i32
  }
  func.func @transform_2(%arg0: i32) -> (i32, i32) {
    %c0_i32 = arith.constant 0 : i32
    %c0_i32_0 = arith.constant 0 : i32
    %c0_i32_1 = arith.constant 0 : i32
    return %c0_i32, %c0_i32_0 : i32, i32
  }
  func.func @transform_3(%arg0: i32) -> (i32, i32) {
    %c0_i32 = arith.constant 0 : i32
    %c0_i32_0 = arith.constant 0 : i32
    return %arg0, %c0_i32 : i32, i32
  }
}

</mosaic_0001>

<llo_original>
// kernel: tpu_custom_call.1
$region0: #{tpu_custom_call.1}
  #allocation0 [shape = 'u32[]', space=smem, size = 0x4, offset = 0x4, fixed_abs, tag = 'smem constant byte address 0x4 - core index']
  #allocation1 [shape = 'u32[144,128]{1,0:T(1,128)}', space=vmem, size = 0x12000, scoped, tag = 'internal scratch']
  %s0 = inlined_call_operand.vmem [shape: f32[8,4], index: 0, kind: input, shape index: {}]
  %s1 = inlined_call_operand.vmem [shape: f32[4,128], index: 1, kind: input, shape index: {}]
  %s2 = inlined_call_operand.vmem [shape: f32[1,128], index: 2, kind: input, shape index: {}]
  %s3 = inlined_call_operand.hbm [shape: f32[8,128], index: 3, kind: output, shape index: {}]
  %s4 = sld [smem:[#allocation0]]
  $region22: #{tpu_custom_call.1} parent=0
    _
  %s6 = ssub.s32 1, %s4
  %s7 = scalar_select 0, %s6, %s4
  $region1: #{tpu_custom_call.1} parent=0
    #allocation2 [shape = 'u8[4096]{0}', space=vmem, size = 0x1000, scoped, tag = 'output window, operand 0, single buffered']
    #allocation3 [shape = 's32[1]{0}', space=sflag, size = 0x4, scoped, tag = 'scoped memory for tpu_custom_call.1']
    %8 = vsyncpa [#allocation3], 0
    // Predicated region
    $region2: #{tpu_custom_call.1} parent=1 // pred_check
      _
    $region3: #{tpu_custom_call.1} parent=1 // pred_check_branch
      %10 = sbr.rel (0) target = $region5
    $region4: #{tpu_custom_call.1} parent=1 // pred_region
      _
    $region5: #{tpu_custom_call.1} parent=1 // pred_fallthru
      _
    // Predicated region
    $region6: #{tpu_custom_call.1} parent=1 // pred_check
      _
    $region7: #{tpu_custom_call.1} parent=1 // pred_check_branch
      %12 = sbr.rel (0) target = $region9
    $region8: #{tpu_custom_call.1} parent=1 // pred_region
      _
    $region9: #{tpu_custom_call.1} parent=1 // pred_fallthru
      _
    // Predicated region
    $region10: #{tpu_custom_call.1} parent=1 // pred_check
      _
    $region11: #{tpu_custom_call.1} parent=1 // pred_check_branch
      %14 = sbr.rel (0) target = $region13
    $region12: #{tpu_custom_call.1} parent=1 // pred_region
      _
    $region13: #{tpu_custom_call.1} parent=1 // pred_fallthru
      _
    %v15 = vld [vmem:[%s0] sm:$0xff]
    %v16 = vld [vmem:[%s1] sm:$0xf]
    %v17 = vld [vmem:[%s2] sm:$0x1]
    %19 = vset.pattern.permute.xlu0 0
    %20 = vperm.xlu0 %19, %v15
    %v21 = vpop.permute.xlu0 %20
    %v23 = vlaneseq
    %v24 = vshrl.u32 %v23, 7
    %v25 = vsub.s32 0, %v24
    %v26 = vrot.slane %v16, %v25
    %v27 = vmul.f32 %v21, %v26
    %v29 = vlaneseq
    %v30 = vshrl.u32 %v29, 7
    %v31 = vsub.s32 0, %v30
    %v32 = vrot.slane %v17, %v31
    %v34 = vadd.f32 %v32, %v27
    %35 = vset.pattern.permute.xlu0 1
    %36 = vperm.xlu0 %35, %v15
    %v37 = vpop.permute.xlu0 %36
    %v39 = vlaneseq
    %v40 = vshrl.u32 %v39, 7
    %v41 = vsub.s32 1, %v40
    %v42 = vrot.slane %v16, %v41
    %v43 = vmul.f32 %v37, %v42
    %v44 = vadd.f32 %v34, %v43
    %45 = vset.pattern.permute.xlu0 2
    %46 = vperm.xlu0 %45, %v15
    %v47 = vpop.permute.xlu0 %46
    %v49 = vlaneseq
    %v50 = vshrl.u32 %v49, 7
    %v51 = vsub.s32 2, %v50
    %v52 = vrot.slane %v16, %v51
    %v53 = vmul.f32 %v47, %v52
    %v54 = vadd.f32 %v44, %v53
    %55 = vset.pattern.permute.xlu0 3
    %56 = vperm.xlu0 %55, %v15
    %v57 = vpop.permute.xlu0 %56
    %v59 = vlaneseq
    %v60 = vshrl.u32 %v59, 7
    %v61 = vsub.s32 3, %v60
    %v62 = vrot.slane %v16, %v61
    %v63 = vmul.f32 %v57, %v62
    %v64 = vadd.f32 %v54, %v63
    %v65 = vand.u32 2147483647, %v64
    %vm66 = vcmp.le.f32.partialorder %v65, 0.7853982
    %vm67 = vcmp.lt.s32.totalorder %v64, 0
    %v68 = vand.u32 %v64, 2139095040
    %v69 = vshrl.u32 %v68, 23
    %v70 = vsub.s32 %v69, 127
    %v71 = vand.u32 2147483647, %v64
    %v72 = vand.u32 %v71, 8388607
    %v73 = vor.u32 %v72, 8388608
    %v74 = vsub.s32 0, %v73
    %v75 = vadd.s32 %v70, 1
    %vm76 = vcmp.gt.s32.totalorder %v75, 0
    %v77 = vsel %vm76, %v75, 0
    %v78 = vshrl.u32 %v77, 5
    %v79 = vand.u32 %v77, 31
    %v80 = vsub.s32 32, %v79
    %v81 = vshrl.u32 683565275, %v80
    %v82 = vshll.u32 683565275, %v79
    %v83 = vshrl.u32 2475754826, %v80
    %v84 = vor.u32 %v82, %v83
    %v85 = vshll.u32 2475754826, %v79
    %v86 = vshrl.u32 2131351028, %v80
    %v87 = vor.u32 %v85, %v86
    %v88 = vshll.u32 2131351028, %v79
    %v89 = vshrl.u32 2102212464, %v80
    %v90 = vor.u32 %v88, %v89
    %v91 = vshll.u32 2102212464, %v79
    %v92 = vshrl.u32 920167782, %v80
    %v93 = vor.u32 %v91, %v92
    %v94 = vshll.u32 920167782, %v79
    %v95 = vshrl.u32 1326507024, %v80
    %v96 = vor.u32 %v94, %v95
    %vm97 = vcmp.lt.s32.totalorder %v78, 1
    %vm98 = vcmp.lt.s32.totalorder %v78, 2
    %vm99 = vcmp.lt.s32.totalorder %v78, 3
    %vm100 = vcmp.lt.s32.totalorder %v78, 4
    %v101 = vsel %vm97, %v81, %v84
    %v102 = vsel %vm100, %v90, 2102212464
    %v103 = vsel %vm99, %v87, %v102
    %v104 = vsel %vm98, %v101, %v103
    %v105 = vsel %vm97, %v84, %v87
    %v106 = vsel %vm100, %v93, 920167782
    %v107 = vsel %vm99, %v90, %v106
    %v108 = vsel %vm98, %v105, %v107
    %v109 = vsel %vm97, %v87, %v90
    %v110 = vsel %vm100, %v96, 1326507024
    %v111 = vsel %vm99, %v93, %v110
    %v112 = vsel %vm98, %v109, %v111
    %v113 = vshll.u32 %v73, 8
    %v114 = vmul.u32.u64.compose %v113, %v112
    %v115 = vextract.low.u32 %v114
    %v116 = vextract.high.u32 %v114
    %v117 = vmul.u32.u64.compose %v113, %v108
    %v118 = vextract.low.u32 %v117
    %v119 = vextract.high.u32 %v117
    %v120 = vmul.u32 %v113, %v104
    %v121 = vadd.s32 %v116, %v118
    %vm122 = vc.u32 %v116, %v118
    %v123 = vadd.s32 %v119, 1
    %v124 = vsel %vm122, %v123, %v119
    %v125 = vadd.s32 %v120, %v124
    %v126 = vadd.s32 %v125, 536870912
    %v127 = vshrl.u32 %v126, 30
    %v128 = vshll.u32 %v127, 30
    %v129 = vsub.s32 %v125, %v128
    %vm130 = vcmp.lt.s32.totalorder %v129, 0
    %v131 = vsub.s32 0, %v129
    %v132 = vsel %vm130, %v131, %v129
    %v133 = vclz %v132
    %v134 = vsub.s32 %v133, 2
    %vm135 = vcmp.gt.s32.totalorder 0, %v134
    %v136 = vsel %vm135, 0, %v134
    %v137 = vsub.s32 32, %v136
    %v138 = vshll.u32 %v129, %v136
    %v139 = vshrl.u32 %v121, %v137
    %v140 = vor.u32 %v138, %v139
    %v141 = vsub.s32 4294967266, %v136
    %v142 = vadd.s32 %v141, 127
    %v143 = vshll.u32 %v142, 23
    %v144 = vor.u32 4788187, %v143
    %v145 = vand.u32 2147483647, %v144
    %v147 = vcvt.s32.f32 %v140
    %v148 = vmul.f32 %v147, %v145
    %v149 = vxor.u32 %v148, 2147483648
    %v150 = vsel %vm67, %v149, %v148
    %v151 = vsub.s32 4, %v127
    %v152 = vsel %vm67, %v151, %v127
    %v153 = vsel %vm66, %v64, %v150
    %v154 = vsel %vm66, 0, %v152
    %v155 = vcosq.f32.pop %v153
    %v156 = vsinq.f32.pop %v153
    %vm157 = vweird.f32 %v64
    %v158 = vadd.s32 %v154, 3
    %v159 = vand.u32 %v158, 3
    %vm160 = vcmp.lt.s32.totalorder %v159, 2
    %vm161 = vcmp.eq.s32.totalorder %v159, 0
    %v162 = vxor.u32 %v156, 2147483648
    %v163 = vsel %vm161, %v155, %v162
    %vm164 = vcmp.eq.s32.totalorder %v159, 2
    %v165 = vxor.u32 %v155, 2147483648
    %v166 = vsel %vm164, %v165, %v156
    %v167 = vsel %vm160, %v163, %v166
    %v168 = vsel %vm157, nan, %v167
    %169 = vst [vmem:[#allocation2] sm:$0xff] %v168
    // Predicated region
    $region14: #{tpu_custom_call.1} parent=1 // pred_check
      _
    $region15: #{tpu_custom_call.1} parent=1 // pred_check_branch
      %171 = sbr.rel (0) target = $region17
    $region16: #{tpu_custom_call.1} parent=1 // pred_region
      %s173 = ssub.s32 128, 128
      %174 = vsyncadd [#allocation3], %s173
      %s176 = sshll.u32 [#allocation2], 4
      %s177 = int_to_ptr.vmem [resolvable:$true] %s176
      %179 = dma.vmem_to_hbm [thread:$0]  %s177, 128, %s3, [#allocation3]
    $region17: #{tpu_custom_call.1} parent=1 // pred_fallthru
      _
    // Predicated region
    $region18: #{tpu_custom_call.1} parent=1 // pred_check
      _
    $region19: #{tpu_custom_call.1} parent=1 // pred_check_branch
      %181 = sbr.rel (0) target = $region21
    $region20: #{tpu_custom_call.1} parent=1 // pred_region
      %182 = dma.done [#allocation3], 128
    $region21: #{tpu_custom_call.1} parent=1 // pred_fallthru
      _
    %183 = vsyncpa [#allocation3], 1

</llo_original>
